<compile_context>
chip_gen: v7x
topology: tpu7x:2x2x1
jax: 0.10.0
libtpu: 0.0.40
codegen_flags: <defaults>
</compile_context>

<pallas_src>
import jax
import jax.numpy as jnp
from jax.experimental import pallas as pl
from jax.experimental.pallas import tpu as pltpu

EPS = 1e-5  # PyTorch BatchNorm1d default eps


def mlp_kernel(
    x_ref,
    w1_ref, b1_ref,
    w2_ref, b2_ref,
    w3_ref, b3_ref,
    w4_ref, b4_ref,          # b4 lives in SMEM
    o_ref,
):
    cdt = w1_ref.dtype  # MXU operand dtype (bf16 by default, f32 optional)

    # In-kernel cast of the x tile (VPU, overlapped with the pipeline) -- avoids
    # a standalone XLA astype pass over the whole x array in HBM.
    x = x_ref[...].astype(cdt)

    # fc1 (+ folded bn1) -> relu            (dropout1 = identity in eval mode)
    h = jnp.dot(x, w1_ref[...], preferred_element_type=jnp.float32)
    h = jnp.maximum(h + b1_ref[...], 0.0)

    # fc2 (+ folded bn2) -> relu            (dropout2 = identity)
    h = jnp.dot(h.astype(cdt), w2_ref[...], preferred_element_type=jnp.float32)
    h = jnp.maximum(h + b2_ref[...], 0.0)

    # fc3 (+ folded bn3) -> relu(relu(.)) == relu   (dropout3 = identity)
    h = jnp.dot(h.astype(cdt), w3_ref[...], preferred_element_type=jnp.float32)
    h = jnp.maximum(h + b3_ref[...], 0.0)

    # fc4 head: [1, 32] . [tile, 32]^T -> [1, tile]; batch lands on the lane
    # axis so the final store is lane-dense (no masked 1-lane column stores).
    logit = jax.lax.dot_general(
        w4_ref[...], h.astype(cdt),
        dimension_numbers=(((1,), (1,)), ((), ())),
        preferred_element_type=jnp.float32,
    )
    o_ref[...] = logit + b4_ref[0, 0]


def _round_up(n, m):
    return ((n + m - 1) // m) * m


def _fold_linear_bn(w, b, gamma, beta, mean, var):
    """Fold eval-mode BatchNorm1d into the preceding Linear layer.
    Returns (W^T * s, (b - mean) * s + beta) with s = gamma / sqrt(var + eps)."""
    s = gamma / jnp.sqrt(var + EPS)
    return w.T * s[None, :], ((b - mean) * s + beta)[None, :]


def _choose_tile(B, tile_b):
    """Batch tile: a multiple of 128 (lane-dense output blocks), capped near
    tile_b, chosen so the grid has an even number (>= 2) of steps whenever B
    allows it so both v7x TensorCores get work on the "parallel" batch axis."""
    tile_b = max(128, _round_up(tile_b, 128))
    n = max(2, -(-B // tile_b))       # at least two tiles ...
    n = _round_up(n, 2)               # ... and an even count of them
    return _round_up(-(-B // n), 128)


def binary_classifier_forward(x, params, *, tile_b=4096, cast_to_bf16=True):
    """x: [B, 11] (f32 or bf16) -> logits [B, 1] float32 (eval-mode forward)."""
    B = x.shape[0]

    w1, b1 = _fold_linear_bn(params["w1"], params["b1"], *params["bn1"])
    w2, b2 = _fold_linear_bn(params["w2"], params["b2"], *params["bn2"])
    w3, b3 = _fold_linear_bn(params["w3"], params["b3"], *params["bn3"])
    w4 = params["w4"]              # [1, 32]  (out, in) -- used un-transposed
    b4 = params["b4"][None, :]     # [1, 1]  -> SMEM scalar

    if cast_to_bf16:
        # Only the (tiny) weights are cast here; the streamed x tile is cast to
        # bf16 inside the kernel, so no extra full-HBM pass over x is added.
        # Accumulation and the bias+ReLU epilogue stay f32 (v5e-safe).
        w1, w2, w3, w4 = (w.astype(jnp.bfloat16) for w in (w1, w2, w3, w4))

    tile = _choose_tile(B, tile_b)
    num_tiles = -(-B // tile)
    b_pad = num_tiles * tile   # pads ONLY the tiny output (4 B/row); x is NOT
                               # padded -- its ragged last block's garbage rows
                               # stay row-local and are sliced off below.

    def resident(arr):  # same block every grid step -> DMA'd once, VMEM-resident
        return pl.BlockSpec(arr.shape, lambda i, a=arr: (0,) * a.ndim)

    out = pl.pallas_call(
        mlp_kernel,
        out_shape=jax.ShapeDtypeStruct((1, b_pad), jnp.float32),
        grid_spec=pltpu.PrefetchScalarGridSpec(
            num_scalar_prefetch=0,
            grid=(num_tiles,),
            in_specs=[
                pl.BlockSpec((tile, x.shape[1]), lambda i: (i, 0)),
                resident(w1), resident(b1),
                resident(w2), resident(b2),
                resident(w3), resident(b3),
                resident(w4),
                pl.BlockSpec(memory_space=pltpu.MemorySpace.SMEM),  # b4 scalar
            ],
            out_specs=pl.BlockSpec((1, tile), lambda i: (0, i)),
        ),
        compiler_params=pltpu.CompilerParams(
            dimension_semantics=("parallel",),  # v7x: shard batch tiles over 2 TCs
        ),
    )(x, w1, b1, w2, b2, w3, b3, w4, b4)

    return out[0, :B][:, None]  # back to [B, 1]


forward = jax.jit(
    binary_classifier_forward, static_argnames=("tile_b", "cast_to_bf16")
)


def init_params(key):
    """PyTorch-default-style init (uniform fan-in Linear; BN gamma=1, beta=0,
    running_mean=0, running_var=1)."""
    dims = [(11, 128), (128, 128), (128, 32), (32, 1)]
    params = {}
    keys = jax.random.split(key, 2 * len(dims))
    for i, (fan_in, fan_out) in enumerate(dims):
        bound = 1.0 / (fan_in ** 0.5)
        params[f"w{i+1}"] = jax.random.uniform(
            keys[2 * i], (fan_out, fan_in), jnp.float32, -bound, bound
        )
        params[f"b{i+1}"] = jax.random.uniform(
            keys[2 * i + 1], (fan_out,), jnp.float32, -bound, bound
        )
    for name, width in (("bn1", 128), ("bn2", 128), ("bn3", 32)):
        params[name] = (
            jnp.ones((width,), jnp.float32),   # gamma
            jnp.zeros((width,), jnp.float32),  # beta
            jnp.zeros((width,), jnp.float32),  # running_mean
            jnp.ones((width,), jnp.float32),   # running_var
        )
    return params


def reference_forward(x, params):
    """Plain-JAX eval-mode reference (matches the PyTorch module)."""
    def lin(h, w, b):
        return jnp.dot(h, w.T, precision=jax.lax.Precision.HIGHEST) + b[None, :]

    def bn(h, gamma, beta, mean, var):
        return (h - mean[None, :]) / jnp.sqrt(var[None, :] + EPS) * gamma[None, :] + beta[None, :]

    h = jnp.maximum(bn(lin(x, params["w1"], params["b1"]), *params["bn1"]), 0.0)
    h = jnp.maximum(bn(lin(h, params["w2"], params["b2"]), *params["bn2"]), 0.0)
    h = jnp.maximum(bn(lin(h, params["w3"], params["b3"]), *params["bn3"]), 0.0)
    return lin(h, params["w4"], params["b4"])


if __name__ == "__main__":
    key = jax.random.PRNGKey(0)
    pkey, xkey = jax.random.split(key)
    params = init_params(pkey)

    # Small case: single (ragged) tile, default bf16 MXU operands.
    B = 16
    x = jax.random.normal(xkey, (B, 11), jnp.float32)
    logits = forward(x, params)
    jax.block_until_ready(logits)
    assert logits.shape == (B, 1) and logits.dtype == jnp.float32
    ref = reference_forward(x, params)
    err = float(jnp.max(jnp.abs(logits - ref)))
    assert jnp.allclose(logits, ref, atol=5e-2, rtol=5e-2), err

    # Multi-tile grid + ragged tail (B not a multiple of the tile), f32 operands.
    B2 = 300
    x2 = jax.random.normal(jax.random.PRNGKey(1), (B2, 11), jnp.float32)
    logits2 = forward(x2, params, tile_b=256, cast_to_bf16=False)
    jax.block_until_ready(logits2)
    assert logits2.shape == (B2, 1)
    ref2 = reference_forward(x2, params)
    err2 = float(jnp.max(jnp.abs(logits2 - ref2)))
    assert jnp.allclose(logits2, ref2, atol=1e-2, rtol=1e-2), err2

    print("KERNEL_OK")
</pallas_src>

<mosaic_0001>
module attributes {stable_mosaic.version = 11 : i64} {
  func.func @mlp_kernel(%arg0: i32, %arg1: memref<128x11xf32, #tpu.memory_space<vmem>>, %arg2: memref<11x128xbf16, #tpu.memory_space<vmem>>, %arg3: memref<1x128xf32, #tpu.memory_space<vmem>>, %arg4: memref<128x128xbf16, #tpu.memory_space<vmem>>, %arg5: memref<1x128xf32, #tpu.memory_space<vmem>>, %arg6: memref<128x32xbf16, #tpu.memory_space<vmem>>, %arg7: memref<1x32xf32, #tpu.memory_space<vmem>>, %arg8: memref<1x32xbf16, #tpu.memory_space<vmem>>, %arg9: memref<1x1xf32, #tpu.memory_space<smem>>, %arg10: memref<1x128xf32, #tpu.memory_space<vmem>>) attributes {dimension_semantics = [#tpu.dimension_semantics<parallel>], iteration_bounds = array<i64: 1>, scalar_prefetch = 0 : i64, scratch_operands = 0 : i64, tpu.core_type = #tpu.core_type<tc>, window_params = [{transform_indices = @transform_0, window_bounds = array<i64: 128, 11>}, {pipeline_mode = #tpu.pipeline_mode<synchronous>, transform_indices = @transform_1, window_bounds = array<i64: 11, 128>}, {pipeline_mode = #tpu.pipeline_mode<synchronous>, transform_indices = @transform_2, window_bounds = array<i64: 1, 128>}, {pipeline_mode = #tpu.pipeline_mode<synchronous>, transform_indices = @transform_3, window_bounds = array<i64: 128, 128>}, {pipeline_mode = #tpu.pipeline_mode<synchronous>, transform_indices = @transform_4, window_bounds = array<i64: 1, 128>}, {pipeline_mode = #tpu.pipeline_mode<synchronous>, transform_indices = @transform_5, window_bounds = array<i64: 128, 32>}, {pipeline_mode = #tpu.pipeline_mode<synchronous>, transform_indices = @transform_6, window_bounds = array<i64: 1, 32>}, {pipeline_mode = #tpu.pipeline_mode<synchronous>, transform_indices = @transform_7, window_bounds = array<i64: 1, 32>}, {transform_indices = @transform_8, window_bounds = array<i64: 1, 1>}, {transform_indices = @transform_9, window_bounds = array<i64: 1, 128>}]} {
    %c0 = arith.constant 0 : index
    %c0_0 = arith.constant 0 : index
    %0 = vector.load %arg1[%c0, %c0_0] : memref<128x11xf32, #tpu.memory_space<vmem>>, vector<128x11xf32>
    %1 = arith.truncf %0 : vector<128x11xf32> to vector<128x11xbf16>
    %c0_1 = arith.constant 0 : index
    %c0_2 = arith.constant 0 : index
    %2 = vector.load %arg2[%c0_1, %c0_2] : memref<11x128xbf16, #tpu.memory_space<vmem>>, vector<11x128xbf16>
    %cst = arith.constant dense<0.000000e+00> : vector<128x128xf32>
    %3 = tpu.matmul %1, %2, %cst {dimension_numbers = #tpu.dot_dimension_numbers<[1], [0], [0], [1], [0, 0, 1, 1], [], []>} : vector<128x11xbf16>, vector<11x128xbf16>, vector<128x128xf32> -> vector<128x128xf32>
    %c0_3 = arith.constant 0 : index
    %c0_4 = arith.constant 0 : index
    %4 = vector.load %arg3[%c0_3, %c0_4] : memref<1x128xf32, #tpu.memory_space<vmem>>, vector<1x128xf32>
    %5 = vector.broadcast %4 : vector<1x128xf32> to vector<128x128xf32>
    %6 = arith.addf %3, %5 : vector<128x128xf32>
    %cst_5 = arith.constant 0.000000e+00 : f32
    %7 = vector.broadcast %cst_5 : f32 to vector<128x128xf32>
    %8 = arith.maximumf %6, %7 : vector<128x128xf32>
    %9 = arith.truncf %8 : vector<128x128xf32> to vector<128x128xbf16>
    %c0_6 = arith.constant 0 : index
    %c0_7 = arith.constant 0 : index
    %10 = vector.load %arg4[%c0_6, %c0_7] : memref<128x128xbf16, #tpu.memory_space<vmem>>, vector<128x128xbf16>
    %cst_8 = arith.constant dense<0.000000e+00> : vector<128x128xf32>
    %11 = tpu.matmul %9, %10, %cst_8 {dimension_numbers = #tpu.dot_dimension_numbers<[1], [0], [0], [1], [0, 0, 1, 1], [], []>} : vector<128x128xbf16>, vector<128x128xbf16>, vector<128x128xf32> -> vector<128x128xf32>
    %c0_9 = arith.constant 0 : index
    %c0_10 = arith.constant 0 : index
    %12 = vector.load %arg5[%c0_9, %c0_10] : memref<1x128xf32, #tpu.memory_space<vmem>>, vector<1x128xf32>
    %13 = vector.broadcast %12 : vector<1x128xf32> to vector<128x128xf32>
    %14 = arith.addf %11, %13 : vector<128x128xf32>
    %cst_11 = arith.constant 0.000000e+00 : f32
    %15 = vector.broadcast %cst_11 : f32 to vector<128x128xf32>
    %16 = arith.maximumf %14, %15 : vector<128x128xf32>
    %17 = arith.truncf %16 : vector<128x128xf32> to vector<128x128xbf16>
    %c0_12 = arith.constant 0 : index
    %c0_13 = arith.constant 0 : index
    %18 = vector.load %arg6[%c0_12, %c0_13] : memref<128x32xbf16, #tpu.memory_space<vmem>>, vector<128x32xbf16>
    %cst_14 = arith.constant dense<0.000000e+00> : vector<128x32xf32>
    %19 = tpu.matmul %17, %18, %cst_14 {dimension_numbers = #tpu.dot_dimension_numbers<[1], [0], [0], [1], [0, 0, 1, 1], [], []>} : vector<128x128xbf16>, vector<128x32xbf16>, vector<128x32xf32> -> vector<128x32xf32>
    %c0_15 = arith.constant 0 : index
    %c0_16 = arith.constant 0 : index
    %20 = vector.load %arg7[%c0_15, %c0_16] : memref<1x32xf32, #tpu.memory_space<vmem>>, vector<1x32xf32>
    %21 = vector.broadcast %20 : vector<1x32xf32> to vector<128x32xf32>
    %22 = arith.addf %19, %21 : vector<128x32xf32>
    %cst_17 = arith.constant 0.000000e+00 : f32
    %23 = vector.broadcast %cst_17 : f32 to vector<128x32xf32>
    %24 = arith.maximumf %22, %23 : vector<128x32xf32>
    %c0_18 = arith.constant 0 : index
    %c0_19 = arith.constant 0 : index
    %25 = vector.load %arg8[%c0_18, %c0_19] : memref<1x32xbf16, #tpu.memory_space<vmem>>, vector<1x32xbf16>
    %26 = arith.truncf %24 : vector<128x32xf32> to vector<128x32xbf16>
    %cst_20 = arith.constant dense<0.000000e+00> : vector<1x128xf32>
    %27 = tpu.matmul %25, %26, %cst_20 {dimension_numbers = #tpu.dot_dimension_numbers<[1], [1], [0], [0], [0, 0, 1, 0], [], []>} : vector<1x32xbf16>, vector<128x32xbf16>, vector<1x128xf32> -> vector<1x128xf32>
    %c0_21 = arith.constant 0 : index
    %c0_22 = arith.constant 0 : index
    %28 = memref.load %arg9[%c0_21, %c0_22] : memref<1x1xf32, #tpu.memory_space<smem>>
    %29 = vector.broadcast %28 : f32 to vector<1x128xf32>
    %30 = arith.addf %27, %29 : vector<1x128xf32>
    %c0_23 = arith.constant 0 : index
    %c0_24 = arith.constant 0 : index
    %31 = vector.load %arg10[%c0_23, %c0_24] : memref<1x128xf32, #tpu.memory_space<vmem>>, vector<1x128xf32>
    tpu.vector_store %arg10[%c0_23, %c0_24], %30 {strides = array<i32>} : memref<1x128xf32, #tpu.memory_space<vmem>>, vector<1x128xf32>,
    return
  }
  func.func @transform_0(%arg0: i32) -> (i32, i32) {
    %c0_i32 = arith.constant 0 : i32
    %c0_i32_0 = arith.constant 0 : i32
    return %arg0, %c0_i32 : i32, i32
  }
  func.func @transform_1(%arg0: i32) -> (i32, i32) {
    %c0_i32 = arith.constant 0 : i32
    %c0_i32_0 = arith.constant 0 : i32
    %c0_i32_1 = arith.constant 0 : i32
    return %c0_i32, %c0_i32_0 : i32, i32
  }
  func.func @transform_2(%arg0: i32) -> (i32, i32) {
    %c0_i32 = arith.constant 0 : i32
    %c0_i32_0 = arith.constant 0 : i32
    %c0_i32_1 = arith.constant 0 : i32
    return %c0_i32, %c0_i32_0 : i32, i32
  }
  func.func @transform_3(%arg0: i32) -> (i32, i32) {
    %c0_i32 = arith.constant 0 : i32
    %c0_i32_0 = arith.constant 0 : i32
    %c0_i32_1 = arith.constant 0 : i32
    return %c0_i32, %c0_i32_0 : i32, i32
  }
  func.func @transform_4(%arg0: i32) -> (i32, i32) {
    %c0_i32 = arith.constant 0 : i32
    %c0_i32_0 = arith.constant 0 : i32
    %c0_i32_1 = arith.constant 0 : i32
    return %c0_i32, %c0_i32_0 : i32, i32
  }
  func.func @transform_5(%arg0: i32) -> (i32, i32) {
    %c0_i32 = arith.constant 0 : i32
    %c0_i32_0 = arith.constant 0 : i32
    %c0_i32_1 = arith.constant 0 : i32
    return %c0_i32, %c0_i32_0 : i32, i32
  }
  func.func @transform_6(%arg0: i32) -> (i32, i32) {
    %c0_i32 = arith.constant 0 : i32
    %c0_i32_0 = arith.constant 0 : i32
    %c0_i32_1 = arith.constant 0 : i32
    return %c0_i32, %c0_i32_0 : i32, i32
  }
  func.func @transform_7(%arg0: i32) -> (i32, i32) {
    %c0_i32 = arith.constant 0 : i32
    %c0_i32_0 = arith.constant 0 : i32
    %c0_i32_1 = arith.constant 0 : i32
    return %c0_i32, %c0_i32_0 : i32, i32
  }
  func.func @transform_8(%arg0: i32) -> (i32, i32) {
    %c0_i32 = arith.constant 0 : i32
    %c0_i32_0 = arith.constant 0 : i32
    %c0_i32_1 = arith.constant 0 : i32
    return %c0_i32, %c0_i32_0 : i32, i32
  }
  func.func @transform_9(%arg0: i32) -> (i32, i32) {
    %c0_i32 = arith.constant 0 : i32
    %c0_i32_0 = arith.constant 0 : i32
    return %c0_i32, %arg0 : i32, i32
  }
}

</mosaic_0001>

<llo_original>
// kernel: binary_classifier_forward.1
$region0: #{binary_classifier_forward.1}
  #allocation0 [shape = 'u32[]', space=smem, size = 0x4, offset = 0x4, fixed_abs, tag = 'smem constant byte address 0x4 - core index']
  #allocation1 [shape = 'u32[144,128]{1,0:T(1,128)}', space=vmem, size = 0x12000, scoped, tag = 'internal scratch']
  #allocation2 [shape = 'f32[1,1]{1,0:T(1,128)S(6)}', space=smem, size = 0x200, scoped, tag = 'scoped memory for binary_classifier_forward.1']
  %s0 = inlined_call_operand.vmem [shape: f32[16,11], index: 0, kind: input, shape index: {}]
  %s1 = inlined_call_operand.vmem [shape: bf16[11,128], index: 1, kind: input, shape index: {}]
  %s2 = inlined_call_operand.vmem [shape: f32[1,128], index: 2, kind: input, shape index: {}]
  %s3 = inlined_call_operand.vmem [shape: bf16[128,128], index: 3, kind: input, shape index: {}]
  %s4 = inlined_call_operand.vmem [shape: f32[1,128], index: 4, kind: input, shape index: {}]
  %s5 = inlined_call_operand.vmem [shape: bf16[128,32], index: 5, kind: input, shape index: {}]
  %s6 = inlined_call_operand.vmem [shape: f32[1,32], index: 6, kind: input, shape index: {}]
  %s7 = inlined_call_operand.vmem [shape: bf16[1,32], index: 7, kind: input, shape index: {}]
  %s8 = inlined_call_operand.<no memory space> [shape: f32[1,1], index: 8, kind: input, shape index: {}]
  %s9 = inlined_call_operand.vmem [shape: f32[1,128], index: 9, kind: output, shape index: {}]
  %s10 = sld [smem:[#allocation0]]
  $region46: #{binary_classifier_forward.1} parent=0
    _
  %s12 = ssub.s32 1, %s10
  %s13 = scalar_select 0, %s12, %s10
  %14 = sst [smem:[#allocation2]] %s8
  // Predicated region
  $region2: #{binary_classifier_forward.1} parent=0 // pred_check
    _
  $region3: #{binary_classifier_forward.1} parent=0 // pred_check_branch
    %16 = sbr.rel (0) target = $region5
  $region4: #{binary_classifier_forward.1} parent=0 // pred_region
    _
  $region5: #{binary_classifier_forward.1} parent=0 // pred_fallthru
    _
  // Predicated region
  $region6: #{binary_classifier_forward.1} parent=0 // pred_check
    _
  $region7: #{binary_classifier_forward.1} parent=0 // pred_check_branch
    %18 = sbr.rel (0) target = $region9
  $region8: #{binary_classifier_forward.1} parent=0 // pred_region
    _
  $region9: #{binary_classifier_forward.1} parent=0 // pred_fallthru
    _
  // Predicated region
  $region10: #{binary_classifier_forward.1} parent=0 // pred_check
    _
  $region11: #{binary_classifier_forward.1} parent=0 // pred_check_branch
    %20 = sbr.rel (0) target = $region13
  $region12: #{binary_classifier_forward.1} parent=0 // pred_region
    _
  $region13: #{binary_classifier_forward.1} parent=0 // pred_fallthru
    _
  // Predicated region
  $region14: #{binary_classifier_forward.1} parent=0 // pred_check
    _
  $region15: #{binary_classifier_forward.1} parent=0 // pred_check_branch
    %22 = sbr.rel (0) target = $region17
  $region16: #{binary_classifier_forward.1} parent=0 // pred_region
    _
  $region17: #{binary_classifier_forward.1} parent=0 // pred_fallthru
    _
  // Predicated region
  $region18: #{binary_classifier_forward.1} parent=0 // pred_check
    _
  $region19: #{binary_classifier_forward.1} parent=0 // pred_check_branch
    %24 = sbr.rel (0) target = $region21
  $region20: #{binary_classifier_forward.1} parent=0 // pred_region
    _
  $region21: #{binary_classifier_forward.1} parent=0 // pred_fallthru
    _
  // Predicated region
  $region22: #{binary_classifier_forward.1} parent=0 // pred_check
    _
  $region23: #{binary_classifier_forward.1} parent=0 // pred_check_branch
    %26 = sbr.rel (0) target = $region25
  $region24: #{binary_classifier_forward.1} parent=0 // pred_region
    _
  $region25: #{binary_classifier_forward.1} parent=0 // pred_fallthru
    _
  // Predicated region
  $region26: #{binary_classifier_forward.1} parent=0 // pred_check
    _
  $region27: #{binary_classifier_forward.1} parent=0 // pred_check_branch
    %28 = sbr.rel (0) target = $region29
  $region28: #{binary_classifier_forward.1} parent=0 // pred_region
    _
  $region29: #{binary_classifier_forward.1} parent=0 // pred_fallthru
    _
  // Predicated region
  $region30: #{binary_classifier_forward.1} parent=0 // pred_check
    _
  $region31: #{binary_classifier_forward.1} parent=0 // pred_check_branch
    %30 = sbr.rel (0) target = $region33
  $region32: #{binary_classifier_forward.1} parent=0 // pred_region
    _
  $region33: #{binary_classifier_forward.1} parent=0 // pred_fallthru
    _
  // Predicated region
  $region34: #{binary_classifier_forward.1} parent=0 // pred_check
    _
  $region35: #{binary_classifier_forward.1} parent=0 // pred_check_branch
    %32 = sbr.rel (0) target = $region37
  $region36: #{binary_classifier_forward.1} parent=0 // pred_region
    _
  $region37: #{binary_classifier_forward.1} parent=0 // pred_fallthru
    _
  %v34 = vld [vmem:[%s0] sm:$0xff]
  %v35 = vld [vmem:[%s0 + $0x8] sm:$0xff]
  %v36 = vld [vmem:[%s0 + $0x10] sm:$0xff]
  %v37 = vld [vmem:[%s0 + $0x18] sm:$0xff]
  %v38 = vld [vmem:[%s0 + $0x20] sm:$0xff]
  %v39 = vld [vmem:[%s0 + $0x28] sm:$0xff]
  %v40 = vld [vmem:[%s0 + $0x30] sm:$0xff]
  %v41 = vld [vmem:[%s0 + $0x38] sm:$0xff]
  %v42 = vld [vmem:[%s0 + $0x40] sm:$0xff]
  %v43 = vld [vmem:[%s0 + $0x48] sm:$0xff]
  %v44 = vld [vmem:[%s0 + $0x50] sm:$0xff]
  %v45 = vld [vmem:[%s0 + $0x58] sm:$0xff]
  %v46 = vld [vmem:[%s0 + $0x60] sm:$0xff]
  %v47 = vld [vmem:[%s0 + $0x68] sm:$0xff]
  %v48 = vld [vmem:[%s0 + $0x70] sm:$0xff]
  %v49 = vld [vmem:[%s0 + $0x78] sm:$0xff]
  %v50 = vpack.c.bf16 %v35, %v34
  %v51 = vpack.c.bf16 %v37, %v36
  %v52 = vpack.c.bf16 %v39, %v38
  %v53 = vpack.c.bf16 %v41, %v40
  %v54 = vpack.c.bf16 %v43, %v42
  %v55 = vpack.c.bf16 %v45, %v44
  %v56 = vpack.c.bf16 %v47, %v46
  %v57 = vpack.c.bf16 %v49, %v48
  %v58 = vld [vmem:[%s1] sm:$0xf]
  %v59 = vld [vmem:[%s1 + $0x4] sm:$0x3]
  %v60 = vld [vmem:[%s2] sm:$0x1]
  %v62 = vlaneseq
  %v63 = vshrl.u32 %v62, 7
  %v64 = vsub.s32 0, %v63
  %v65 = vrot.slane %v60, %v64
  %v69 = vunpack.c.l.b16 %v58
  %v70 = vunpack.c.l.b16 %v59
  %v71 = vpack.c.b16 %v70, %v69
  %vm72 = vcmask 89088
  %v74 = vsel %vm72, %v50, 0
  %v77 = vsel %vm72, %v51, 0
  %v80 = vsel %vm72, %v52, 0
  %v83 = vsel %vm72, %v53, 0
  %v86 = vsel %vm72, %v54, 0
  %v89 = vsel %vm72, %v55, 0
  %v92 = vsel %vm72, %v56, 0
  %v95 = vsel %vm72, %v57, 0
  %vm97 = vcmask 1044480
  %vm98 = vcmask 1045504
  %v99 = vsel %vm97, 4294967295, 65535
  %v100 = vsel %vm98, %v99, 0
  %v102 = vand.u32 %v71, %v100
  %104 = vmatprep.subr.bf16.mxu0 0
  %105 = vmatpush1.bf16.msra.mxu0 %v102
  %106 = vmatprep.subr.bf16.mxu0 0
  %107 = vmatpush1.bf16.msra.mxu0 0
  %108 = vmatprep.subr.bf16.mxu0 0
  %109 = vmatpush1.bf16.msra.mxu0 0
  %110 = vmatprep.subr.bf16.mxu0 0
  %111 = vmatpush1.bf16.msra.mxu0 0
  %112 = vmatprep.subr.bf16.mxu0 0
  %113 = vmatpush1.bf16.msra.mxu0 0
  %114 = vmatprep.subr.bf16.mxu0 0
  %115 = vmatpush1.bf16.msra.mxu0 0
  %116 = vmatprep.subr.bf16.mxu0 0
  %117 = vmatpush1.bf16.msra.mxu0 0
  %118 = vmatprep.subr.bf16.mxu0 0
  %119 = vmatpush1.bf16.msra.mxu0 0
  %120 = vmatprep.subr.bf16.mxu0 0
  %121 = vmatpush1.bf16.msra.mxu0 0
  %122 = vmatprep.subr.bf16.mxu0 0
  %123 = vmatpush1.bf16.msra.mxu0 0
  %124 = vmatprep.subr.bf16.mxu0 0
  %125 = vmatpush1.bf16.msra.mxu0 0
  %126 = vmatprep.subr.bf16.mxu0 0
  %127 = vmatpush1.bf16.msra.mxu0 0
  %128 = vmatprep.subr.bf16.mxu0 0
  %129 = vmatpush1.bf16.msra.mxu0 0
  %130 = vmatprep.subr.bf16.mxu0 0
  %131 = vmatpush1.bf16.msra.mxu0 0
  %132 = vmatprep.subr.bf16.mxu0 0
  %133 = vmatpush1.bf16.msra.mxu0 0
  %134 = vmatprep.subr.bf16.mxu0 0
  %135 = vmatpush1.bf16.msra.mxu0 0
  %136 = vmatprep.mubr.bf16.mxu0 0
  %137 = vmatmul.mubr.bf16.gmra.mrb[0].mxu0 %v74
  %v138 = vpop.f32.mrb[0].mxu0
  %v139 = vadd.f32 %v65, %v138
  %v140 = vpop.f32.mrb[0].mxu0
  %v141 = vpop.f32.mrb[0].mxu0
  %v142 = vadd.f32 %v65, %v141
  %v143 = vpop.f32.mrb[0].mxu0
  %144 = vmatprep.mubr.bf16.mxu0 0
  %145 = vmatmul.mubr.bf16.gmra.mrb[0].mxu0 %v77
  %v146 = vpop.f32.mrb[0].mxu0
  %v147 = vadd.f32 %v65, %v146
  %v148 = vpop.f32.mrb[0].mxu0
  %v149 = vpop.f32.mrb[0].mxu0
  %v150 = vadd.f32 %v65, %v149
  %v151 = vpop.f32.mrb[0].mxu0
  %152 = vmatprep.mubr.bf16.mxu0 0
  %153 = vmatmul.mubr.bf16.gmra.mrb[0].mxu0 %v80
  %v154 = vpop.f32.mrb[0].mxu0
  %v155 = vadd.f32 %v65, %v154
  %v156 = vpop.f32.mrb[0].mxu0
  %v157 = vpop.f32.mrb[0].mxu0
  %v158 = vadd.f32 %v65, %v157
  %v159 = vpop.f32.mrb[0].mxu0
  %160 = vmatprep.mubr.bf16.mxu0 0
  %161 = vmatmul.mubr.bf16.gmra.mrb[0].mxu0 %v83
  %v162 = vpop.f32.mrb[0].mxu0
  %v163 = vadd.f32 %v65, %v162
  %v164 = vpop.f32.mrb[0].mxu0
  %v165 = vpop.f32.mrb[0].mxu0
  %v166 = vadd.f32 %v65, %v165
  %v167 = vpop.f32.mrb[0].mxu0
  %168 = vmatprep.mubr.bf16.mxu0 0
  %169 = vmatmul.mubr.bf16.gmra.mrb[0].mxu0 %v86
  %v170 = vpop.f32.mrb[0].mxu0
  %v171 = vadd.f32 %v65, %v170
  %v172 = vpop.f32.mrb[0].mxu0
  %v173 = vpop.f32.mrb[0].mxu0
  %v174 = vadd.f32 %v65, %v173
  %v175 = vpop.f32.mrb[0].mxu0
  %176 = vmatprep.mubr.bf16.mxu0 0
  %177 = vmatmul.mubr.bf16.gmra.mrb[0].mxu0 %v89
  %v178 = vpop.f32.mrb[0].mxu0
  %v179 = vadd.f32 %v65, %v178
  %v180 = vpop.f32.mrb[0].mxu0
  %v181 = vpop.f32.mrb[0].mxu0
  %v182 = vadd.f32 %v65, %v181
  %v183 = vpop.f32.mrb[0].mxu0
  %184 = vmatprep.mubr.bf16.mxu0 0
  %185 = vmatmul.mubr.bf16.gmra.mrb[0].mxu0 %v92
  %v186 = vpop.f32.mrb[0].mxu0
  %v187 = vadd.f32 %v65, %v186
  %v188 = vpop.f32.mrb[0].mxu0
  %v189 = vpop.f32.mrb[0].mxu0
  %v190 = vadd.f32 %v65, %v189
  %v191 = vpop.f32.mrb[0].mxu0
  %192 = vmatprep.mubr.bf16.mxu0 0
  %193 = vmatmul.mubr.bf16.gmra.mrb[0].mxu0 %v95
  %v194 = vpop.f32.mrb[0].mxu0
  %v195 = vadd.f32 %v65, %v194
  %v196 = vpop.f32.mrb[0].mxu0
  %v197 = vpop.f32.mrb[0].mxu0
  %v198 = vadd.f32 %v65, %v197
  %v199 = vpop.f32.mrb[0].mxu0
  %200 = vdwg.mxu0
  %v201 = vmax.f32 %v139, 0.0
  %v202 = vmax.f32 %v142, 0.0
  %v203 = vmax.f32 %v147, 0.0
  %v204 = vmax.f32 %v150, 0.0
  %v205 = vmax.f32 %v155, 0.0
  %v206 = vmax.f32 %v158, 0.0
  %v207 = vmax.f32 %v163, 0.0
  %v208 = vmax.f32 %v166, 0.0
  %v209 = vmax.f32 %v171, 0.0
  %v210 = vmax.f32 %v174, 0.0
  %v211 = vmax.f32 %v179, 0.0
  %v212 = vmax.f32 %v182, 0.0
  %v213 = vmax.f32 %v187, 0.0
  %v214 = vmax.f32 %v190, 0.0
  %v215 = vmax.f32 %v195, 0.0
  %v216 = vmax.f32 %v198, 0.0
  %v217 = vpack.c.bf16 %v202, %v201
  %v218 = vpack.c.bf16 %v204, %v203
  %v219 = vpack.c.bf16 %v206, %v205
  %v220 = vpack.c.bf16 %v208, %v207
  %v221 = vpack.c.bf16 %v210, %v209
  %v222 = vpack.c.bf16 %v212, %v211
  %v223 = vpack.c.bf16 %v214, %v213
  %v224 = vpack.c.bf16 %v216, %v215
  %v225 = vld [vmem:[%s3] sm:$0xf]
  %v226 = vld [vmem:[%s3 + $0x4] sm:$0xf]
  %v227 = vld [vmem:[%s3 + $0x8] sm:$0xf]
  %v228 = vld [vmem:[%s3 + $0xc] sm:$0xf]
  %v229 = vld [vmem:[%s3 + $0x10] sm:$0xf]
  %v230 = vld [vmem:[%s3 + $0x14] sm:$0xf]
  %v231 = vld [vmem:[%s3 + $0x18] sm:$0xf]
  %v232 = vld [vmem:[%s3 + $0x1c] sm:$0xf]
  %v233 = vld [vmem:[%s3 + $0x20] sm:$0xf]
  %v234 = vld [vmem:[%s3 + $0x24] sm:$0xf]
  %v235 = vld [vmem:[%s3 + $0x28] sm:$0xf]
  %v236 = vld [vmem:[%s3 + $0x2c] sm:$0xf]
  %v237 = vld [vmem:[%s3 + $0x30] sm:$0xf]
  %v238 = vld [vmem:[%s3 + $0x34] sm:$0xf]
  %v239 = vld [vmem:[%s3 + $0x38] sm:$0xf]
  %v240 = vld [vmem:[%s3 + $0x3c] sm:$0xf]
  %v241 = vld [vmem:[%s4] sm:$0x1]
  %v243 = vlaneseq
  %v244 = vshrl.u32 %v243, 7
  %v245 = vsub.s32 0, %v244
  %v246 = vrot.slane %v241, %v245
  %v264 = vunpack.c.l.b16 %v225
  %v265 = vunpack.c.l.b16 %v226
  %v266 = vunpack.c.l.b16 %v227
  %v267 = vunpack.c.l.b16 %v228
  %v268 = vunpack.c.l.b16 %v229
  %v269 = vunpack.c.l.b16 %v230
  %v270 = vunpack.c.l.b16 %v231
  %v271 = vunpack.c.l.b16 %v232
  %v272 = vunpack.c.l.b16 %v233
  %v273 = vunpack.c.l.b16 %v234
  %v274 = vunpack.c.l.b16 %v235
  %v275 = vunpack.c.l.b16 %v236
  %v276 = vunpack.c.l.b16 %v237
  %v277 = vunpack.c.l.b16 %v238
  %v278 = vunpack.c.l.b16 %v239
  %v279 = vunpack.c.l.b16 %v240
  %v280 = vpack.c.b16 %v265, %v264
  %v281 = vpack.c.b16 %v267, %v266
  %v282 = vpack.c.b16 %v269, %v268
  %v283 = vpack.c.b16 %v271, %v270
  %v284 = vpack.c.b16 %v273, %v272
  %v285 = vpack.c.b16 %v275, %v274
  %v286 = vpack.c.b16 %v277, %v276
  %v287 = vpack.c.b16 %v279, %v278
  %296 = vmatprep.subr.bf16.mxu0 0
  %297 = vmatpush1.bf16.msra.mxu0 %v280
  %298 = vmatprep.subr.bf16.mxu0 0
  %299 = vmatpush1.bf16.msra.mxu0 %v281
  %300 = vmatprep.subr.bf16.mxu0 0
  %301 = vmatpush1.bf16.msra.mxu0 %v282
  %302 = vmatprep.subr.bf16.mxu0 0
  %303 = vmatpush1.bf16.msra.mxu0 %v283
  %304 = vmatprep.subr.bf16.mxu0 0
  %305 = vmatpush1.bf16.msra.mxu0 %v284
  %306 = vmatprep.subr.bf16.mxu0 0
  %307 = vmatpush1.bf16.msra.mxu0 %v285
  %308 = vmatprep.subr.bf16.mxu0 0
  %309 = vmatpush1.bf16.msra.mxu0 %v286
  %310 = vmatprep.subr.bf16.mxu0 0
  %311 = vmatpush1.bf16.msra.mxu0 %v287
  %312 = vmatprep.subr.bf16.mxu0 0
  %313 = vmatpush1.bf16.msra.mxu0 0
  %314 = vmatprep.subr.bf16.mxu0 0
  %315 = vmatpush1.bf16.msra.mxu0 0
  %316 = vmatprep.subr.bf16.mxu0 0
  %317 = vmatpush1.bf16.msra.mxu0 0
  %318 = vmatprep.subr.bf16.mxu0 0
  %319 = vmatpush1.bf16.msra.mxu0 0
  %320 = vmatprep.subr.bf16.mxu0 0
  %321 = vmatpush1.bf16.msra.mxu0 0
  %322 = vmatprep.subr.bf16.mxu0 0
  %323 = vmatpush1.bf16.msra.mxu0 0
  %324 = vmatprep.subr.bf16.mxu0 0
  %325 = vmatpush1.bf16.msra.mxu0 0
  %326 = vmatprep.subr.bf16.mxu0 0
  %327 = vmatpush1.bf16.msra.mxu0 0
  %328 = vmatprep.mubr.bf16.mxu0 0
  %329 = vmatmul.mubr.bf16.gmra.mrb[0].mxu0 %v217
  %v330 = vpop.f32.mrb[0].mxu0
  %v331 = vadd.f32 %v246, %v330
  %v332 = vpop.f32.mrb[0].mxu0
  %v333 = vpop.f32.mrb[0].mxu0
  %v334 = vadd.f32 %v246, %v333
  %v335 = vpop.f32.mrb[0].mxu0
  %336 = vmatprep.mubr.bf16.mxu0 0
  %337 = vmatmul.mubr.bf16.gmra.mrb[0].mxu0 %v218
  %v338 = vpop.f32.mrb[0].mxu0
  %v339 = vadd.f32 %v246, %v338
  %v340 = vpop.f32.mrb[0].mxu0
  %v341 = vpop.f32.mrb[0].mxu0
  %v342 = vadd.f32 %v246, %v341
  %v343 = vpop.f32.mrb[0].mxu0
  %344 = vmatprep.mubr.bf16.mxu0 0
  %345 = vmatmul.mubr.bf16.gmra.mrb[0].mxu0 %v219
  %v346 = vpop.f32.mrb[0].mxu0
  %v347 = vadd.f32 %v246, %v346
  %v348 = vpop.f32.mrb[0].mxu0
  %v349 = vpop.f32.mrb[0].mxu0
  %v350 = vadd.f32 %v246, %v349
  %v351 = vpop.f32.mrb[0].mxu0
  %352 = vmatprep.mubr.bf16.mxu0 0
  %353 = vmatmul.mubr.bf16.gmra.mrb[0].mxu0 %v220
  %v354 = vpop.f32.mrb[0].mxu0
  %v355 = vadd.f32 %v246, %v354
  %v356 = vpop.f32.mrb[0].mxu0
  %v357 = vpop.f32.mrb[0].mxu0
  %v358 = vadd.f32 %v246, %v357
  %v359 = vpop.f32.mrb[0].mxu0
  %360 = vmatprep.mubr.bf16.mxu0 0
  %361 = vmatmul.mubr.bf16.gmra.mrb[0].mxu0 %v221
  %v362 = vpop.f32.mrb[0].mxu0
  %v363 = vadd.f32 %v246, %v362
  %v364 = vpop.f32.mrb[0].mxu0
  %v365 = vpop.f32.mrb[0].mxu0
  %v366 = vadd.f32 %v246, %v365
  %v367 = vpop.f32.mrb[0].mxu0
  %368 = vmatprep.mubr.bf16.mxu0 0
  %369 = vmatmul.mubr.bf16.gmra.mrb[0].mxu0 %v222
  %v370 = vpop.f32.mrb[0].mxu0
  %v371 = vadd.f32 %v246, %v370
  %v372 = vpop.f32.mrb[0].mxu0
  %v373 = vpop.f32.mrb[0].mxu0
  %v374 = vadd.f32 %v246, %v373
  %v375 = vpop.f32.mrb[0].mxu0
  %376 = vmatprep.mubr.bf16.mxu0 0
  %377 = vmatmul.mubr.bf16.gmra.mrb[0].mxu0 %v223
  %v378 = vpop.f32.mrb[0].mxu0
  %v379 = vadd.f32 %v246, %v378
  %v380 = vpop.f32.mrb[0].mxu0
  %v381 = vpop.f32.mrb[0].mxu0
  %v382 = vadd.f32 %v246, %v381
  %v383 = vpop.f32.mrb[0].mxu0
  %384 = vmatprep.mubr.bf16.mxu0 0
  %385 = vmatmul.mubr.bf16.gmra.mrb[0].mxu0 %v224
  %v386 = vpop.f32.mrb[0].mxu0
  %v387 = vadd.f32 %v246, %v386
  %v388 = vpop.f32.mrb[0].mxu0
  %v389 = vpop.f32.mrb[0].mxu0
  %v390 = vadd.f32 %v246, %v389
  %v391 = vpop.f32.mrb[0].mxu0
  %392 = vdwg.mxu0
  %v393 = vmax.f32 %v331, 0.0
  %v394 = vmax.f32 %v334, 0.0
  %v395 = vmax.f32 %v339, 0.0
  %v396 = vmax.f32 %v342, 0.0
  %v397 = vmax.f32 %v347, 0.0
  %v398 = vmax.f32 %v350, 0.0
  %v399 = vmax.f32 %v355, 0.0
  %v400 = vmax.f32 %v358, 0.0
  %v401 = vmax.f32 %v363, 0.0
  %v402 = vmax.f32 %v366, 0.0
  %v403 = vmax.f32 %v371, 0.0
  %v404 = vmax.f32 %v374, 0.0
  %v405 = vmax.f32 %v379, 0.0
  %v406 = vmax.f32 %v382, 0.0
  %v407 = vmax.f32 %v387, 0.0
  %v408 = vmax.f32 %v390, 0.0
  %v409 = vpack.c.bf16 %v394, %v393
  %v410 = vpack.c.bf16 %v396, %v395
  %v411 = vpack.c.bf16 %v398, %v397
  %v412 = vpack.c.bf16 %v400, %v399
  %v413 = vpack.c.bf16 %v402, %v401
  %v414 = vpack.c.bf16 %v404, %v403
  %v415 = vpack.c.bf16 %v406, %v405
  %v416 = vpack.c.bf16 %v408, %v407
  %v417 = vld [vmem:[%s5] sm:$0xf]
  %v418 = vld [vmem:[%s5 + $0x4] sm:$0xf]
  %v419 = vld [vmem:[%s5 + $0x8] sm:$0xf]
  %v420 = vld [vmem:[%s5 + $0xc] sm:$0xf]
  %v421 = vld [vmem:[%s5 + $0x10] sm:$0xf]
  %v422 = vld [vmem:[%s5 + $0x14] sm:$0xf]
  %v423 = vld [vmem:[%s5 + $0x18] sm:$0xf]
  %v424 = vld [vmem:[%s5 + $0x1c] sm:$0xf]
  %v425 = vld [vmem:[%s5 + $0x20] sm:$0xf]
  %v426 = vld [vmem:[%s5 + $0x24] sm:$0xf]
  %v427 = vld [vmem:[%s5 + $0x28] sm:$0xf]
  %v428 = vld [vmem:[%s5 + $0x2c] sm:$0xf]
  %v429 = vld [vmem:[%s5 + $0x30] sm:$0xf]
  %v430 = vld [vmem:[%s5 + $0x34] sm:$0xf]
  %v431 = vld [vmem:[%s5 + $0x38] sm:$0xf]
  %v432 = vld [vmem:[%s5 + $0x3c] sm:$0xf]
  %v433 = vld [vmem:[%s6] sm:$0x1]
  %v435 = vlaneseq
  %v436 = vshrl.u32 %v435, 7
  %v437 = vsub.s32 0, %v436
  %v438 = vrot.slane %v433, %v437
  %v456 = vunpack.c.l.b16 %v417
  %v457 = vunpack.c.l.b16 %v418
  %v458 = vunpack.c.l.b16 %v419
  %v459 = vunpack.c.l.b16 %v420
  %v460 = vunpack.c.l.b16 %v421
  %v461 = vunpack.c.l.b16 %v422
  %v462 = vunpack.c.l.b16 %v423
  %v463 = vunpack.c.l.b16 %v424
  %v464 = vunpack.c.l.b16 %v425
  %v465 = vunpack.c.l.b16 %v426
  %v466 = vunpack.c.l.b16 %v427
  %v467 = vunpack.c.l.b16 %v428
  %v468 = vunpack.c.l.b16 %v429
  %v469 = vunpack.c.l.b16 %v430
  %v470 = vunpack.c.l.b16 %v431
  %v471 = vunpack.c.l.b16 %v432
  %v472 = vpack.c.b16 %v457, %v456
  %v473 = vpack.c.b16 %v459, %v458
  %v474 = vpack.c.b16 %v461, %v460
  %v475 = vpack.c.b16 %v463, %v462
  %v476 = vpack.c.b16 %v465, %v464
  %v477 = vpack.c.b16 %v467, %v466
  %v478 = vpack.c.b16 %v469, %v468
  %v479 = vpack.c.b16 %v471, %v470
  %488 = vmatprep.subr.bf16.mxu0 0
  %489 = vmatpush1.bf16.msra.mxu0 %v472
  %490 = vmatprep.subr.bf16.mxu0 0
  %491 = vmatpush1.bf16.msra.mxu0 %v473
  %492 = vmatprep.subr.bf16.mxu0 0
  %493 = vmatpush1.bf16.msra.mxu0 %v474
  %494 = vmatprep.subr.bf16.mxu0 0
  %495 = vmatpush1.bf16.msra.mxu0 %v475
  %496 = vmatprep.subr.bf16.mxu0 0
  %497 = vmatpush1.bf16.msra.mxu0 %v476
  %498 = vmatprep.subr.bf16.mxu0 0
  %499 = vmatpush1.bf16.msra.mxu0 %v477
  %500 = vmatprep.subr.bf16.mxu0 0
  %501 = vmatpush1.bf16.msra.mxu0 %v478
  %502 = vmatprep.subr.bf16.mxu0 0
  %503 = vmatpush1.bf16.msra.mxu0 %v479
  %504 = vmatprep.subr.bf16.mxu0 0
  %505 = vmatpush1.bf16.msra.mxu0 0
  %506 = vmatprep.subr.bf16.mxu0 0
  %507 = vmatpush1.bf16.msra.mxu0 0
  %508 = vmatprep.subr.bf16.mxu0 0
  %509 = vmatpush1.bf16.msra.mxu0 0
  %510 = vmatprep.subr.bf16.mxu0 0
  %511 = vmatpush1.bf16.msra.mxu0 0
  %512 = vmatprep.subr.bf16.mxu0 0
  %513 = vmatpush1.bf16.msra.mxu0 0
  %514 = vmatprep.subr.bf16.mxu0 0
  %515 = vmatpush1.bf16.msra.mxu0 0
  %516 = vmatprep.subr.bf16.mxu0 0
  %517 = vmatpush1.bf16.msra.mxu0 0
  %518 = vmatprep.subr.bf16.mxu0 0
  %519 = vmatpush1.bf16.msra.mxu0 0
  %520 = vmatprep.mubr.bf16.mxu0 0
  %521 = vmatmul.mubr.bf16.gmra.mrb[0].mxu0 %v409
  %v522 = vpop.f32.mrb[0].mxu0
  %v523 = vadd.f32 %v438, %v522
  %v524 = vpop.f32.mrb[0].mxu0
  %v525 = vpop.f32.mrb[0].mxu0
  %v526 = vadd.f32 %v438, %v525
  %v527 = vpop.f32.mrb[0].mxu0
  %528 = vmatprep.mubr.bf16.mxu0 0
  %529 = vmatmul.mubr.bf16.gmra.mrb[0].mxu0 %v410
  %v530 = vpop.f32.mrb[0].mxu0
  %v531 = vadd.f32 %v438, %v530
  %v532 = vpop.f32.mrb[0].mxu0
  %v533 = vpop.f32.mrb[0].mxu0
  %v534 = vadd.f32 %v438, %v533
  %v535 = vpop.f32.mrb[0].mxu0
  %536 = vmatprep.mubr.bf16.mxu0 0
  %537 = vmatmul.mubr.bf16.gmra.mrb[0].mxu0 %v411
  %v538 = vpop.f32.mrb[0].mxu0
  %v539 = vadd.f32 %v438, %v538
  %v540 = vpop.f32.mrb[0].mxu0
  %v541 = vpop.f32.mrb[0].mxu0
  %v542 = vadd.f32 %v438, %v541
  %v543 = vpop.f32.mrb[0].mxu0
  %544 = vmatprep.mubr.bf16.mxu0 0
  %545 = vmatmul.mubr.bf16.gmra.mrb[0].mxu0 %v412
  %v546 = vpop.f32.mrb[0].mxu0
  %v547 = vadd.f32 %v438, %v546
  %v548 = vpop.f32.mrb[0].mxu0
  %v549 = vpop.f32.mrb[0].mxu0
  %v550 = vadd.f32 %v438, %v549
  %v551 = vpop.f32.mrb[0].mxu0
  %552 = vmatprep.mubr.bf16.mxu0 0
  %553 = vmatmul.mubr.bf16.gmra.mrb[0].mxu0 %v413
  %v554 = vpop.f32.mrb[0].mxu0
  %v555 = vadd.f32 %v438, %v554
  %v556 = vpop.f32.mrb[0].mxu0
  %v557 = vpop.f32.mrb[0].mxu0
  %v558 = vadd.f32 %v438, %v557
  %v559 = vpop.f32.mrb[0].mxu0
  %560 = vmatprep.mubr.bf16.mxu0 0
  %561 = vmatmul.mubr.bf16.gmra.mrb[0].mxu0 %v414
  %v562 = vpop.f32.mrb[0].mxu0
  %v563 = vadd.f32 %v438, %v562
  %v564 = vpop.f32.mrb[0].mxu0
  %v565 = vpop.f32.mrb[0].mxu0
  %v566 = vadd.f32 %v438, %v565
  %v567 = vpop.f32.mrb[0].mxu0
  %568 = vmatprep.mubr.bf16.mxu0 0
  %569 = vmatmul.mubr.bf16.gmra.mrb[0].mxu0 %v415
  %v570 = vpop.f32.mrb[0].mxu0
  %v571 = vadd.f32 %v438, %v570
  %v572 = vpop.f32.mrb[0].mxu0
  %v573 = vpop.f32.mrb[0].mxu0
  %v574 = vadd.f32 %v438, %v573
  %v575 = vpop.f32.mrb[0].mxu0
  %576 = vmatprep.mubr.bf16.mxu0 0
  %577 = vmatmul.mubr.bf16.gmra.mrb[0].mxu0 %v416
  %v578 = vpop.f32.mrb[0].mxu0
  %v579 = vadd.f32 %v438, %v578
  %v580 = vpop.f32.mrb[0].mxu0
  %v581 = vpop.f32.mrb[0].mxu0
  %v582 = vadd.f32 %v438, %v581
  %v583 = vpop.f32.mrb[0].mxu0
  %584 = vdwg.mxu0
  %v585 = vmax.f32 %v523, 0.0
  %v586 = vmax.f32 %v526, 0.0
  %v587 = vmax.f32 %v531, 0.0
  %v588 = vmax.f32 %v534, 0.0
  %v589 = vmax.f32 %v539, 0.0
  %v590 = vmax.f32 %v542, 0.0
  %v591 = vmax.f32 %v547, 0.0
  %v592 = vmax.f32 %v550, 0.0
  %v593 = vmax.f32 %v555, 0.0
  %v594 = vmax.f32 %v558, 0.0
  %v595 = vmax.f32 %v563, 0.0
  %v596 = vmax.f32 %v566, 0.0
  %v597 = vmax.f32 %v571, 0.0
  %v598 = vmax.f32 %v574, 0.0
  %v599 = vmax.f32 %v579, 0.0
  %v600 = vmax.f32 %v582, 0.0
  %v601 = vld [vmem:[%s7] sm:$0x1]
  %v602 = vpack.c.bf16 %v586, %v585
  %v603 = vpack.c.bf16 %v588, %v587
  %v604 = vpack.c.bf16 %v590, %v589
  %v605 = vpack.c.bf16 %v592, %v591
  %v606 = vpack.c.bf16 %v594, %v593
  %v607 = vpack.c.bf16 %v596, %v595
  %v608 = vpack.c.bf16 %v598, %v597
  %v609 = vpack.c.bf16 %v600, %v599
  %s610 = sld [smem:[#allocation2]]
  %v611 = vstv %s610
  %vm612 = vcmask 261120
  %v614 = vsel %vm612, %v601, 0
  %v617 = vsel %vm612, %v602, 0
  %v620 = vsel %vm612, %v603, 0
  %v623 = vsel %vm612, %v604, 0
  %v626 = vsel %vm612, %v605, 0
  %v629 = vsel %vm612, %v606, 0
  %v632 = vsel %vm612, %v607, 0
  %v635 = vsel %vm612, %v608, 0
  %v638 = vsel %vm612, %v609, 0
  %640 = vmatprep.subr.bf16.mxu0 0
  %641 = vmatpush1.bf16.xpose.msra.mxu0 %v617
  %642 = vmatprep.subr.bf16.mxu0 0
  %643 = vmatpush1.bf16.xpose.msra.mxu0 %v620
  %644 = vmatprep.subr.bf16.mxu0 0
  %645 = vmatpush1.bf16.xpose.msra.mxu0 %v623
  %646 = vmatprep.subr.bf16.mxu0 0
  %647 = vmatpush1.bf16.xpose.msra.mxu0 %v626
  %648 = vmatprep.subr.bf16.mxu0 0
  %649 = vmatpush1.bf16.xpose.msra.mxu0 %v629
  %650 = vmatprep.subr.bf16.mxu0 0
  %651 = vmatpush1.bf16.xpose.msra.mxu0 %v632
  %652 = vmatprep.subr.bf16.mxu0 0
  %653 = vmatpush1.bf16.xpose.msra.mxu0 %v635
  %654 = vmatprep.subr.bf16.mxu0 0
  %655 = vmatpush1.bf16.xpose.msra.mxu0 %v638
  %656 = vmatprep.subr.bf16.mxu0 0
  %657 = vmatpush1.bf16.xpose.msra.mxu0 0
  %658 = vmatprep.subr.bf16.mxu0 0
  %659 = vmatpush1.bf16.xpose.msra.mxu0 0
  %660 = vmatprep.subr.bf16.mxu0 0
  %661 = vmatpush1.bf16.xpose.msra.mxu0 0
  %662 = vmatprep.subr.bf16.mxu0 0
  %663 = vmatpush1.bf16.xpose.msra.mxu0 0
  %664 = vmatprep.subr.bf16.mxu0 0
  %665 = vmatpush1.bf16.xpose.msra.mxu0 0
  %666 = vmatprep.subr.bf16.mxu0 0
  %667 = vmatpush1.bf16.xpose.msra.mxu0 0
  %668 = vmatprep.subr.bf16.mxu0 0
  %669 = vmatpush1.bf16.xpose.msra.mxu0 0
  %670 = vmatprep.subr.bf16.mxu0 0
  %671 = vmatpush1.bf16.xpose.msra.mxu0 0
  %672 = vmatprep.mubr.bf16.mxu0 0
  %673 = vmatmul.mubr.bf16.gmra.mrb[0].mxu0 %v614
  %v674 = vpop.f32.mrb[0].mxu0
  %v675 = vadd.f32 %v611, %v674
  %v676 = vpop.f32.mrb[0].mxu0
  %v677 = vpop.f32.mrb[0].mxu0
  %v678 = vpop.f32.mrb[0].mxu0
  %679 = vdwg.mxu0
  %680 = vst [vmem:[%s9] sm:$0x1] %v675
  // Predicated region
  $region38: #{binary_classifier_forward.1} parent=0 // pred_check
    _
  $region39: #{binary_classifier_forward.1} parent=0 // pred_check_branch
    %682 = sbr.rel (0) target = $region41
  $region40: #{binary_classifier_forward.1} parent=0 // pred_region
    _
  $region41: #{binary_classifier_forward.1} parent=0 // pred_fallthru
    _
  // Predicated region
  $region42: #{binary_classifier_forward.1} parent=0 // pred_check
    _
  $region43: #{binary_classifier_forward.1} parent=0 // pred_check_branch
    %684 = sbr.rel (0) target = $region45
  $region44: #{binary_classifier_forward.1} parent=0 // pred_region
    _
  $region45: #{binary_classifier_forward.1} parent=0 // pred_fallthru
    _

</llo_original>
